<compile_context>
chip_gen: v7x
topology: tpu7x:2x2x1
jax: 0.10.0
libtpu: 0.0.40
codegen_flags: <defaults>
</compile_context>

<pallas_src>
import functools

import jax
import jax.numpy as jnp
from jax.experimental import pallas as pl
from jax.experimental.pallas import tpu as pltpu


# --------------------------------- kernel ------------------------------------
def _block_kernel(x_ref, w2_ref, b2_ref, w1_ref, b1_ref, out_ref, *, H):
    """Fused conv2+BN+SiLU -> conv1+BN+SiLU -> +x for one block of images.

    x_ref:   (M, W*C_in)  f32, M = images_per_step * H (row = (image, h))
    w2_ref:  (3*W*C_in,  W*C_hid) bf16 banded weights (ky folded into K)
    w1_ref:  (3*W*C_hid, W*C_out) bf16 banded weights
    b*_ref:  (1, W*C_*) f32 folded BN bias
    out_ref: (M, W*C_out)
    """
    x = x_ref[...]                                         # (M, W*C_in) f32
    M = x.shape[0]

    # Per-image row index -> masks implementing 'same' padding along H
    # (the +-1 row shifts below must not leak across image boundaries).
    row = jax.lax.broadcasted_iota(jnp.int32, (M, 1), 0)
    r = row % H
    not_first = r != 0                                     # (M, 1) bool
    not_last = r != (H - 1)

    def im2col_rows(v):
        """(M, Wc) -> (M, 3*Wc): [v[h-1] | v[h] | v[h+1]] with zeros at each
        image's first/last row (3 ky taps folded into the matmul K axis)."""
        zrow = jnp.zeros((1, v.shape[1]), v.dtype)
        up = jnp.concatenate([zrow, v[:-1, :]], axis=0)    # row h <- v[h-1]
        dn = jnp.concatenate([v[1:, :], zrow], axis=0)     # row h <- v[h+1]
        up = jnp.where(not_first, up, 0.0)
        dn = jnp.where(not_last, dn, 0.0)
        return jnp.concatenate([up, v, dn], axis=1)        # (M, 3*Wc)

    # ---- conv2: C_in -> C_hid, 3x3, BN folded, SiLU (one bf16 matmul) ------
    lhs2 = im2col_rows(x).astype(jnp.bfloat16)             # (M, 3*W*C_in)
    y = jnp.dot(lhs2, w2_ref[...], preferred_element_type=jnp.float32)
    y = y + b2_ref[...]
    y = y * jax.nn.sigmoid(y)                              # SiLU in f32

    # ---- conv1: C_hid -> C_out, 3x3, BN folded, SiLU (one bf16 matmul) -----
    lhs1 = im2col_rows(y).astype(jnp.bfloat16)             # (M, 3*W*C_hid)
    z = jnp.dot(lhs1, w1_ref[...], preferred_element_type=jnp.float32)
    z = z + b1_ref[...]
    z = z * jax.nn.sigmoid(z)

    # ---- shortcut add (ch_in == ch_out); residual reuses the same x value --
    out_ref[...] = (x + z).astype(out_ref.dtype)


# ----------------------------- host-side folding -----------------------------
def _fold_bn_banded(w_oihw, gamma, beta, mean, var, *, W, eps=1e-5):
    """Fold inference BatchNorm into the conv, then expand the 3x3 kernel into
    a block-banded matrix of shape (3*W*C_in, W*C_out) that implements the 3
    kx taps + 'same' W padding (per ky) and stacks the 3 ky taps along rows
    (so ky is folded into the matmul K axis).

    Returns (big_w bf16 (3*W*C_in, W*C_out), bias_row f32 (1, W*C_out)).
    """
    c_out, c_in = w_oihw.shape[0], w_oihw.shape[1]
    scale = gamma / jnp.sqrt(var + eps)                    # (C_out,)
    w = w_oihw * scale[:, None, None, None]                # (C_out,C_in,3,3)
    w_taps = jnp.transpose(w, (2, 3, 1, 0))                # (ky,kx,C_in,C_out)

    p = jnp.arange(W)[:, None]                             # input pixel
    q = jnp.arange(W)[None, :]                             # output pixel
    kx = p - q + 1                                         # tap index (W, W)
    valid = ((kx >= 0) & (kx <= 2)).astype(w_taps.dtype)
    kx_c = jnp.clip(kx, 0, 2)
    # big[ky, p, q, ci, co] = w_taps[ky, kx(p,q), ci, co] inside the band
    big = w_taps[:, kx_c] * valid[None, :, :, None, None]  # (3,W,W,Cin,Cout)
    big = jnp.transpose(big, (0, 1, 3, 2, 4)).reshape(3, W * c_in, W * c_out)
    big = big.reshape(3 * W * c_in, W * c_out).astype(jnp.bfloat16)

    bias = beta - mean * scale                             # (C_out,)
    bias_row = jnp.tile(bias, W)[None, :].astype(jnp.float32)
    return big, bias_row


def _check_banded_shapes(W, c_in, c_hid, c_out):
    # The banded weight is only 3/W dense: acceptable when W*C is small (the
    # alternative K = C would leave the MXU mostly idle), but wasteful / huge
    # at production GFPN sizes.  Guard instead of silently paying 10-27x MXU.
    if (W * max(c_in, c_hid, c_out) > 1024) or (max(c_in, c_hid, c_out) >= 128):
        raise NotImplementedError(
            "banded-weight path only targets small W*C; use a channels-on-lanes "
            "layout with compact (9*C_in, C_out) weights and H-band halo tiling "
            "for production GFPN shapes (see TODO(synk) at top of file).")


# --------------------------------- wrapper ------------------------------------
def basic_block_3x3_reverse(x_nchw, params, shortcut=True, images_per_step=None):
    """Run the fused block. x_nchw: (N, C_in, H, W) float32.

    images_per_step: images processed per grid step.  Default (None) = whole
    batch -> grid=(1,), best on single-TensorCore chips (v5e/v6e).  On v7x set
    it to N // 2 (or any divisor giving >= 2 steps with NB*H still large) so
    the 'parallel' grid axis is split across both TensorCores.
    """
    assert shortcut, "module is used with shortcut=True (ch_in == ch_out)"
    N, c_in, H, W = x_nchw.shape
    c_hid = params["conv2_w"].shape[0]
    c_out = params["conv1_w"].shape[0]
    assert c_in == c_out
    _check_banded_shapes(W, c_in, c_hid, c_out)

    w2, b2 = _fold_bn_banded(params["conv2_w"], *params["bn2"], W=W)  # in ->hid
    w1, b1 = _fold_bn_banded(params["conv1_w"], *params["bn1"], W=W)  # hid->out

    NB = N if images_per_step is None else images_per_step
    assert N % NB == 0
    M = NB * H
    assert M % 8 == 0, "images_per_step * H must be a multiple of 8"

    # NCHW -> (N*H, W*C): lane-dense last axis (here W*c_in = 128).  Kept NCHW
    # at the interface to match the PyTorch module; in a full-model port the
    # (N, H, W*C) layout would be carried end-to-end (see TODO at top).
    x_flat = jnp.transpose(x_nchw, (0, 2, 3, 1)).reshape(N * H, W * c_in)

    kernel = functools.partial(_block_kernel, H=H)

    out_flat = pl.pallas_call(
        kernel,
        out_shape=jax.ShapeDtypeStruct((N * H, W * c_out), x_nchw.dtype),
        grid=(N // NB,),
        in_specs=[
            pl.BlockSpec((M, W * c_in), lambda n: (n, 0)),
            pl.BlockSpec((3 * W * c_in, W * c_hid), lambda n: (0, 0)),
            pl.BlockSpec((1, W * c_hid), lambda n: (0, 0)),
            pl.BlockSpec((3 * W * c_hid, W * c_out), lambda n: (0, 0)),
            pl.BlockSpec((1, W * c_out), lambda n: (0, 0)),
        ],
        out_specs=pl.BlockSpec((M, W * c_out), lambda n: (n, 0)),
        compiler_params=pltpu.CompilerParams(
            dimension_semantics=("parallel",)),
    )(x_flat, w2, b2, w1, b1)

    # (N*H, W*C) -> NCHW to match the PyTorch output convention.
    return jnp.transpose(out_flat.reshape(N, H, W, c_out), (0, 3, 1, 2))


# ----------------------------- reference (plain JAX) -------------------------
def _conv_bn_silu_ref(x_nchw, w_oihw, bn, eps=1e-5):
    gamma, beta, mean, var = bn
    y = jax.lax.conv_general_dilated(
        x_nchw, w_oihw, window_strides=(1, 1), padding=((1, 1), (1, 1)),
        dimension_numbers=("NCHW", "OIHW", "NCHW"))
    scale = gamma / jnp.sqrt(var + eps)
    y = y * scale[None, :, None, None] + (beta - mean * scale)[None, :, None, None]
    return y * jax.nn.sigmoid(y)


def _block_ref(x, params):
    y = _conv_bn_silu_ref(x, params["conv2_w"], params["bn2"])
    y = _conv_bn_silu_ref(y, params["conv1_w"], params["bn1"])
    return x + y


# --------------------------------- main --------------------------------------
if __name__ == "__main__":
    # BasicBlock_3x3_Reverse(ch_in=8, ch_hidden_ratio=2.0, ch_out=8, shortcut=True)
    ch_in, ch_out = 8, 8
    ch_hidden = int(ch_in * 2.0)          # 16
    N, H, W = 2, 16, 16                   # W*ch_in = 128 -> lane-dense

    key = jax.random.PRNGKey(0)
    kx, kw2, kw1, _ = jax.random.split(key, 4)

    x = jax.random.normal(kx, (N, ch_in, H, W), jnp.float32)

    # Deterministic "synthetic checkpoint": conv weights (OIHW, no bias) and
    # BatchNorm (gamma, beta, running_mean, running_var) per Conv block.
    params = {
        "conv2_w": 0.1 * jax.random.normal(kw2, (ch_hidden, ch_in, 3, 3), jnp.float32),
        "conv1_w": 0.1 * jax.random.normal(kw1, (ch_out, ch_hidden, 3, 3), jnp.float32),
        "bn2": (
            1.0 + 0.05 * jnp.arange(ch_hidden, dtype=jnp.float32),   # gamma
            0.01 * jnp.arange(ch_hidden, dtype=jnp.float32),         # beta
            0.02 * jnp.arange(ch_hidden, dtype=jnp.float32),         # running_mean
            1.0 + 0.03 * jnp.arange(ch_hidden, dtype=jnp.float32),   # running_var
        ),
        "bn1": (
            1.0 + 0.05 * jnp.arange(ch_out, dtype=jnp.float32),
            0.01 * jnp.arange(ch_out, dtype=jnp.float32),
            0.02 * jnp.arange(ch_out, dtype=jnp.float32),
            1.0 + 0.03 * jnp.arange(ch_out, dtype=jnp.float32),
        ),
    }

    out = basic_block_3x3_reverse(x, params, shortcut=True)
    out = jax.block_until_ready(out)

    ref = _block_ref(x, params)
    assert out.shape == (N, ch_out, H, W)
    # bf16 matmul operands (f32 accumulation) -> tolerance loosened vs the
    # all-f32 version.
    max_err = jnp.max(jnp.abs(out - ref))
    assert jnp.allclose(out, ref, atol=7.5e-2, rtol=5e-2), \
        f"max abs err {max_err}"
    print("KERNEL_OK")
</pallas_src>

<mosaic_0001>
module attributes {stable_mosaic.version = 11 : i64} {
  func.func @_block_kernel(%arg0: i32, %arg1: memref<32x128xf32, #tpu.memory_space<vmem>>, %arg2: memref<384x256xbf16, #tpu.memory_space<vmem>>, %arg3: memref<1x256xf32, #tpu.memory_space<vmem>>, %arg4: memref<768x128xbf16, #tpu.memory_space<vmem>>, %arg5: memref<1x128xf32, #tpu.memory_space<vmem>>, %arg6: memref<32x128xf32, #tpu.memory_space<vmem>>) attributes {dimension_semantics = [#tpu.dimension_semantics<parallel>], iteration_bounds = array<i64: 1>, scalar_prefetch = 0 : i64, scratch_operands = 0 : i64, tpu.core_type = #tpu.core_type<tc>, window_params = [{transform_indices = @transform_0, window_bounds = array<i64: 32, 128>}, {pipeline_mode = #tpu.pipeline_mode<synchronous>, transform_indices = @transform_1, window_bounds = array<i64: 384, 256>}, {pipeline_mode = #tpu.pipeline_mode<synchronous>, transform_indices = @transform_2, window_bounds = array<i64: 1, 256>}, {pipeline_mode = #tpu.pipeline_mode<synchronous>, transform_indices = @transform_3, window_bounds = array<i64: 768, 128>}, {pipeline_mode = #tpu.pipeline_mode<synchronous>, transform_indices = @transform_4, window_bounds = array<i64: 1, 128>}, {transform_indices = @transform_5, window_bounds = array<i64: 32, 128>}]} {
    %c0 = arith.constant 0 : index
    %c0_0 = arith.constant 0 : index
    %0 = vector.load %arg1[%c0, %c0_0] : memref<32x128xf32, #tpu.memory_space<vmem>>, vector<32x128xf32>
    %1 = tpu.iota {dimensions = array<i32: 0>} : vector<32x1xi32>
    %c16_i32 = arith.constant 16 : i32
    %c0_i32 = arith.constant 0 : i32
    %2 = arith.cmpi eq, %c16_i32, %c0_i32 : i32
    %c1_i32 = arith.constant 1 : i32
    %3 = arith.select %2, %c1_i32, %c16_i32 : i32
    %4 = vector.broadcast %3 : i32 to vector<32x1xi32>
    %5 = arith.remsi %1, %4 : vector<32x1xi32>
    %c0_i32_1 = arith.constant 0 : i32
    %6 = vector.broadcast %c0_i32_1 : i32 to vector<32x1xi32>
    %7 = arith.cmpi ne, %5, %6 : vector<32x1xi32>
    %c0_i32_2 = arith.constant 0 : i32
    %8 = vector.broadcast %c0_i32_2 : i32 to vector<32x1xi32>
    %9 = arith.cmpi slt, %5, %8 : vector<32x1xi32>
    %c0_i32_3 = arith.constant 0 : i32
    %10 = arith.cmpi slt, %3, %c0_i32_3 : i32
    %11 = vector.broadcast %10 : i1 to vector<32x1xi1>
    %12 = vector.broadcast %11 : vector<32x1xi1> to vector<32x1xi1>
    %13 = arith.xori %9, %12 : vector<32x1xi1>
    %14 = arith.andi %13, %7 : vector<32x1xi1>
    %15 = vector.broadcast %3 : i32 to vector<32x1xi32>
    %16 = arith.addi %5, %15 : vector<32x1xi32>
    %17 = arith.select %14, %16, %5 : vector<32x1xi1>, vector<32x1xi32>
    %c0_i32_4 = arith.constant 0 : i32
    %18 = vector.broadcast %c0_i32_4 : i32 to vector<32x1xi32>
    %19 = arith.cmpi ne, %17, %18 : vector<32x1xi32>
    %c15_i32 = arith.constant 15 : i32
    %20 = vector.broadcast %c15_i32 : i32 to vector<32x1xi32>
    %21 = arith.cmpi ne, %17, %20 : vector<32x1xi32>
    %cst = arith.constant 0.000000e+00 : f32
    %22 = vector.broadcast %cst : f32 to vector<1x128xf32>
    %23 = vector.extract_strided_slice %0 {offsets = [0, 0], sizes = [31, 128], strides = [1, 1]} : vector<32x128xf32> to vector<31x128xf32>
    %24 = tpu.concatenate %22, %23 in 0 : vector<1x128xf32>, vector<31x128xf32> -> vector<32x128xf32>
    %25 = vector.extract_strided_slice %0 {offsets = [1, 0], sizes = [31, 128], strides = [1, 1]} : vector<32x128xf32> to vector<31x128xf32>
    %26 = tpu.concatenate %25, %22 in 0 : vector<31x128xf32>, vector<1x128xf32> -> vector<32x128xf32>
    %cst_5 = arith.constant 0.000000e+00 : f32
    %27 = vector.shape_cast %19 : vector<32x1xi1> to vector<32x1xi1>
    %28 = vector.broadcast %27 : vector<32x1xi1> to vector<32x128xi1>
    %29 = vector.broadcast %cst_5 : f32 to vector<32x128xf32>
    %30 = arith.select %28, %24, %29 : vector<32x128xi1>, vector<32x128xf32>
    %cst_6 = arith.constant 0.000000e+00 : f32
    %31 = vector.shape_cast %21 : vector<32x1xi1> to vector<32x1xi1>
    %32 = vector.broadcast %31 : vector<32x1xi1> to vector<32x128xi1>
    %33 = vector.broadcast %cst_6 : f32 to vector<32x128xf32>
    %34 = arith.select %32, %26, %33 : vector<32x128xi1>, vector<32x128xf32>
    %35 = tpu.concatenate %30, %0, %34 in 1 : vector<32x128xf32>, vector<32x128xf32>, vector<32x128xf32> -> vector<32x384xf32>
    %36 = arith.truncf %35 : vector<32x384xf32> to vector<32x384xbf16>
    %c0_7 = arith.constant 0 : index
    %c0_8 = arith.constant 0 : index
    %37 = vector.load %arg2[%c0_7, %c0_8] : memref<384x256xbf16, #tpu.memory_space<vmem>>, vector<384x256xbf16>
    %cst_9 = arith.constant dense<0.000000e+00> : vector<32x256xf32>
    %38 = tpu.matmul %36, %37, %cst_9 {dimension_numbers = #tpu.dot_dimension_numbers<[1], [0], [0], [1], [0, 0, 1, 1], [], []>} : vector<32x384xbf16>, vector<384x256xbf16>, vector<32x256xf32> -> vector<32x256xf32>
    %c0_10 = arith.constant 0 : index
    %c0_11 = arith.constant 0 : index
    %39 = vector.load %arg3[%c0_10, %c0_11] : memref<1x256xf32, #tpu.memory_space<vmem>>, vector<1x256xf32>
    %40 = vector.broadcast %39 : vector<1x256xf32> to vector<32x256xf32>
    %41 = arith.addf %38, %40 : vector<32x256xf32>
    %42 = arith.negf %41 : vector<32x256xf32>
    %43 = math.exp %42 : vector<32x256xf32>
    %cst_12 = arith.constant 1.000000e+00 : f32
    %44 = vector.broadcast %cst_12 : f32 to vector<32x256xf32>
    %45 = arith.addf %44, %43 : vector<32x256xf32>
    %46 = arith.divf %44, %45 : vector<32x256xf32>
    %47 = arith.mulf %41, %46 : vector<32x256xf32>
    %cst_13 = arith.constant 0.000000e+00 : f32
    %48 = vector.broadcast %cst_13 : f32 to vector<1x256xf32>
    %49 = vector.extract_strided_slice %47 {offsets = [0, 0], sizes = [31, 256], strides = [1, 1]} : vector<32x256xf32> to vector<31x256xf32>
    %50 = tpu.concatenate %48, %49 in 0 : vector<1x256xf32>, vector<31x256xf32> -> vector<32x256xf32>
    %51 = vector.extract_strided_slice %47 {offsets = [1, 0], sizes = [31, 256], strides = [1, 1]} : vector<32x256xf32> to vector<31x256xf32>
    %52 = tpu.concatenate %51, %48 in 0 : vector<31x256xf32>, vector<1x256xf32> -> vector<32x256xf32>
    %cst_14 = arith.constant 0.000000e+00 : f32
    %53 = vector.shape_cast %19 : vector<32x1xi1> to vector<32x1xi1>
    %54 = vector.broadcast %53 : vector<32x1xi1> to vector<32x256xi1>
    %55 = vector.broadcast %cst_14 : f32 to vector<32x256xf32>
    %56 = arith.select %54, %50, %55 : vector<32x256xi1>, vector<32x256xf32>
    %cst_15 = arith.constant 0.000000e+00 : f32
    %57 = vector.shape_cast %21 : vector<32x1xi1> to vector<32x1xi1>
    %58 = vector.broadcast %57 : vector<32x1xi1> to vector<32x256xi1>
    %59 = vector.broadcast %cst_15 : f32 to vector<32x256xf32>
    %60 = arith.select %58, %52, %59 : vector<32x256xi1>, vector<32x256xf32>
    %61 = tpu.concatenate %56, %47, %60 in 1 : vector<32x256xf32>, vector<32x256xf32>, vector<32x256xf32> -> vector<32x768xf32>
    %62 = arith.truncf %61 : vector<32x768xf32> to vector<32x768xbf16>
    %c0_16 = arith.constant 0 : index
    %c0_17 = arith.constant 0 : index
    %63 = vector.load %arg4[%c0_16, %c0_17] : memref<768x128xbf16, #tpu.memory_space<vmem>>, vector<768x128xbf16>
    %cst_18 = arith.constant dense<0.000000e+00> : vector<32x128xf32>
    %64 = tpu.matmul %62, %63, %cst_18 {dimension_numbers = #tpu.dot_dimension_numbers<[1], [0], [0], [1], [0, 0, 1, 1], [], []>} : vector<32x768xbf16>, vector<768x128xbf16>, vector<32x128xf32> -> vector<32x128xf32>
    %c0_19 = arith.constant 0 : index
    %c0_20 = arith.constant 0 : index
    %65 = vector.load %arg5[%c0_19, %c0_20] : memref<1x128xf32, #tpu.memory_space<vmem>>, vector<1x128xf32>
    %66 = vector.broadcast %65 : vector<1x128xf32> to vector<32x128xf32>
    %67 = arith.addf %64, %66 : vector<32x128xf32>
    %68 = arith.negf %67 : vector<32x128xf32>
    %69 = math.exp %68 : vector<32x128xf32>
    %cst_21 = arith.constant 1.000000e+00 : f32
    %70 = vector.broadcast %cst_21 : f32 to vector<32x128xf32>
    %71 = arith.addf %70, %69 : vector<32x128xf32>
    %72 = arith.divf %70, %71 : vector<32x128xf32>
    %73 = arith.mulf %67, %72 : vector<32x128xf32>
    %74 = arith.addf %0, %73 : vector<32x128xf32>
    %c0_22 = arith.constant 0 : index
    %c0_23 = arith.constant 0 : index
    %75 = vector.load %arg6[%c0_22, %c0_23] : memref<32x128xf32, #tpu.memory_space<vmem>>, vector<32x128xf32>
    tpu.vector_store %arg6[%c0_22, %c0_23], %74 {strides = array<i32>} : memref<32x128xf32, #tpu.memory_space<vmem>>, vector<32x128xf32>,
    return
  }
  func.func @transform_0(%arg0: i32) -> (i32, i32) {
    %c0_i32 = arith.constant 0 : i32
    %c0_i32_0 = arith.constant 0 : i32
    return %arg0, %c0_i32 : i32, i32
  }
  func.func @transform_1(%arg0: i32) -> (i32, i32) {
    %c0_i32 = arith.constant 0 : i32
    %c0_i32_0 = arith.constant 0 : i32
    %c0_i32_1 = arith.constant 0 : i32
    return %c0_i32, %c0_i32_0 : i32, i32
  }
  func.func @transform_2(%arg0: i32) -> (i32, i32) {
    %c0_i32 = arith.constant 0 : i32
    %c0_i32_0 = arith.constant 0 : i32
    %c0_i32_1 = arith.constant 0 : i32
    return %c0_i32, %c0_i32_0 : i32, i32
  }
  func.func @transform_3(%arg0: i32) -> (i32, i32) {
    %c0_i32 = arith.constant 0 : i32
    %c0_i32_0 = arith.constant 0 : i32
    %c0_i32_1 = arith.constant 0 : i32
    return %c0_i32, %c0_i32_0 : i32, i32
  }
  func.func @transform_4(%arg0: i32) -> (i32, i32) {
    %c0_i32 = arith.constant 0 : i32
    %c0_i32_0 = arith.constant 0 : i32
    %c0_i32_1 = arith.constant 0 : i32
    return %c0_i32, %c0_i32_0 : i32, i32
  }
  func.func @transform_5(%arg0: i32) -> (i32, i32) {
    %c0_i32 = arith.constant 0 : i32
    %c0_i32_0 = arith.constant 0 : i32
    return %arg0, %c0_i32 : i32, i32
  }
}

</mosaic_0001>

<llo_original>
// kernel: tpu_custom_call.1
$region0: #{tpu_custom_call.1}
  #allocation0 [shape = 'u32[]', space=smem, size = 0x4, offset = 0x4, fixed_abs, tag = 'smem constant byte address 0x4 - core index']
  #allocation1 [shape = 'u32[144,128]{1,0:T(1,128)}', space=vmem, size = 0x12000, scoped, tag = 'internal scratch']
  %s0 = inlined_call_operand.hbm [shape: f32[32,128], index: 0, kind: input, shape index: {}]
  %s1 = inlined_call_operand.hbm [shape: bf16[384,256], index: 1, kind: input, shape index: {}]
  %s2 = inlined_call_operand.vmem [shape: f32[1,256], index: 2, kind: input, shape index: {}]
  %s3 = inlined_call_operand.hbm [shape: bf16[768,128], index: 3, kind: input, shape index: {}]
  %s4 = inlined_call_operand.vmem [shape: f32[1,128], index: 4, kind: input, shape index: {}]
  %s5 = inlined_call_operand.hbm [shape: f32[32,128], index: 5, kind: output, shape index: {}]
  %s6 = sld [smem:[#allocation0]]
  $region42: #{tpu_custom_call.1} parent=0
    _
  %s8 = ssub.s32 1, %s6
  %s9 = scalar_select 0, %s8, %s6
  $region1: #{tpu_custom_call.1} parent=0
    #allocation2 [shape = 'u8[16384]{0}', space=vmem, size = 0x4000, scoped, tag = 'input window, operand 0, single buffered']
    #allocation3 [shape = 's32[1]{0}', space=sflag, size = 0x4, scoped, tag = 'scoped memory for tpu_custom_call.1']
    #allocation4 [shape = 's32[1]{0}', space=sflag, size = 0x4, scoped, tag = 'scoped memory for tpu_custom_call.1']
    #allocation5 [shape = 'u8[196608]{0}', space=vmem, size = 0x30000, scoped, tag = 'input window, operand 1, single buffered']
    #allocation6 [shape = 's32[1]{0}', space=sflag, size = 0x4, scoped, tag = 'scoped memory for tpu_custom_call.1']
    #allocation7 [shape = 'u8[196608]{0}', space=vmem, size = 0x30000, scoped, tag = 'input window, operand 3, single buffered']
    #allocation8 [shape = 'u8[16384]{0}', space=vmem, size = 0x4000, scoped, tag = 'output window, operand 0, single buffered']
    %10 = vsyncpa [#allocation3], 0
    %11 = vsyncpa [#allocation6], 0
    %12 = vsyncpa [#allocation4], 0
    // Predicated region
    $region2: #{tpu_custom_call.1} parent=1 // pred_check
      _
    $region3: #{tpu_custom_call.1} parent=1 // pred_check_branch
      %14 = sbr.rel (0) target = $region5
    $region4: #{tpu_custom_call.1} parent=1 // pred_region
      %s16 = ssub.s32 512, 512
      %17 = vsyncadd [#allocation3], %s16
      %s18 = sshll.u32 [#allocation2], 4
      %s19 = int_to_ptr.vmem [resolvable:$true] %s18
      %24 = dma.hbm_to_vmem [thread:$0]  %s0, 512, %s19, [#allocation3], 128, 128, 8
    $region5: #{tpu_custom_call.1} parent=1 // pred_fallthru
      _
    // Predicated region
    $region6: #{tpu_custom_call.1} parent=1 // pred_check
      _
    $region7: #{tpu_custom_call.1} parent=1 // pred_check_branch
      %26 = sbr.rel (0) target = $region9
    $region8: #{tpu_custom_call.1} parent=1 // pred_region
      %s28 = ssub.s32 6144, 6144
      %29 = vsyncadd [#allocation6], %s28
      %s30 = sshll.u32 [#allocation5], 4
      %s31 = int_to_ptr.vmem [resolvable:$true] %s30
      %36 = dma.hbm_to_vmem [thread:$0]  %s1, 6144, %s31, [#allocation6], 128, 128, 8
    $region9: #{tpu_custom_call.1} parent=1 // pred_fallthru
      _
    // Predicated region
    $region10: #{tpu_custom_call.1} parent=1 // pred_check
      _
    $region11: #{tpu_custom_call.1} parent=1 // pred_check_branch
      %38 = sbr.rel (0) target = $region13
    $region12: #{tpu_custom_call.1} parent=1 // pred_region
      _
    $region13: #{tpu_custom_call.1} parent=1 // pred_fallthru
      _
    // Predicated region
    $region14: #{tpu_custom_call.1} parent=1 // pred_check
      _
    $region15: #{tpu_custom_call.1} parent=1 // pred_check_branch
      %40 = sbr.rel (0) target = $region17
    $region16: #{tpu_custom_call.1} parent=1 // pred_region
      %s42 = ssub.s32 6144, 6144
      %43 = vsyncadd [#allocation6], %s42
      %s44 = sshll.u32 [#allocation7], 4
      %s45 = int_to_ptr.vmem [resolvable:$true] %s44
      %50 = dma.hbm_to_vmem [thread:$0]  %s3, 6144, %s45, [#allocation6], 64, 64, 4
    $region17: #{tpu_custom_call.1} parent=1 // pred_fallthru
      _
    // Predicated region
    $region18: #{tpu_custom_call.1} parent=1 // pred_check
      _
    $region19: #{tpu_custom_call.1} parent=1 // pred_check_branch
      %52 = sbr.rel (0) target = $region21
    $region20: #{tpu_custom_call.1} parent=1 // pred_region
      _
    $region21: #{tpu_custom_call.1} parent=1 // pred_fallthru
      _
    // Predicated region
    $region22: #{tpu_custom_call.1} parent=1 // pred_check
      _
    $region23: #{tpu_custom_call.1} parent=1 // pred_check_branch
      %54 = sbr.rel (0) target = $region25
    $region24: #{tpu_custom_call.1} parent=1 // pred_region
      %55 = dma.done [#allocation3], 512
    $region25: #{tpu_custom_call.1} parent=1 // pred_fallthru
      _
    // Predicated region
    $region26: #{tpu_custom_call.1} parent=1 // pred_check
      _
    $region27: #{tpu_custom_call.1} parent=1 // pred_check_branch
      %57 = sbr.rel (0) target = $region29
    $region28: #{tpu_custom_call.1} parent=1 // pred_region
      %58 = dma.done [#allocation6], 6144
    $region29: #{tpu_custom_call.1} parent=1 // pred_fallthru
      _
    // Predicated region
    $region30: #{tpu_custom_call.1} parent=1 // pred_check
      _
    $region31: #{tpu_custom_call.1} parent=1 // pred_check_branch
      %60 = sbr.rel (0) target = $region33
    $region32: #{tpu_custom_call.1} parent=1 // pred_region
      %61 = dma.done [#allocation6], 6144
    $region33: #{tpu_custom_call.1} parent=1 // pred_fallthru
      _
    %v63 = vld [vmem:[#allocation2] sm:$0xff]
    %v64 = vld [vmem:[#allocation2 + $0x8] sm:$0xff]
    %v65 = vld [vmem:[#allocation2 + $0x10] sm:$0xff]
    %v66 = vld [vmem:[#allocation2 + $0x18] sm:$0xff]
    %v67 = vlaneseq
    %v68 = vshrl.u32 %v67, 7
    %v69 = vadd.s32 %v68, 8
    %v70 = vadd.s32 %v68, 16
    %v71 = vadd.s32 %v68, 24
    %vm72 = vcmp.lt.s32.totalorder %v68, 0
    %v73 = vsub.s32 0, %v68
    %v74 = vsel %vm72, %v73, %v68
    %v75 = vshrl.u32 %v74, 4
    %v76 = vand.u32 %v74, 15
    %v77 = vsub.s32 0, %v76
    %v78 = vsel %vm72, %v77, %v76
    %vm79 = vcmp.lt.s32.totalorder %v69, 0
    %v80 = vsub.s32 0, %v69
    %v81 = vsel %vm79, %v80, %v69
    %v82 = vshrl.u32 %v81, 4
    %v83 = vand.u32 %v81, 15
    %v84 = vsub.s32 0, %v83
    %v85 = vsel %vm79, %v84, %v83
    %vm86 = vcmp.lt.s32.totalorder %v70, 0
    %v87 = vsub.s32 0, %v70
    %v88 = vsel %vm86, %v87, %v70
    %v89 = vshrl.u32 %v88, 4
    %v90 = vand.u32 %v88, 15
    %v91 = vsub.s32 0, %v90
    %v92 = vsel %vm86, %v91, %v90
    %vm93 = vcmp.lt.s32.totalorder %v71, 0
    %v94 = vsub.s32 0, %v71
    %v95 = vsel %vm93, %v94, %v71
    %v96 = vshrl.u32 %v95, 4
    %v97 = vand.u32 %v95, 15
    %v98 = vsub.s32 0, %v97
    %v99 = vsel %vm93, %v98, %v97
    %vm100 = vcmp.ne.s32.totalorder %v78, 0
    %vm101 = vcmp.ne.s32.totalorder %v85, 0
    %vm102 = vcmp.ne.s32.totalorder %v92, 0
    %vm103 = vcmp.ne.s32.totalorder %v99, 0
    %vm104 = vcmp.lt.s32.totalorder %v78, 0
    %vm105 = vcmp.lt.s32.totalorder %v85, 0
    %vm106 = vcmp.lt.s32.totalorder %v92, 0
    %vm107 = vcmp.lt.s32.totalorder %v99, 0
    %vm108 = vmand %vm104, %vm100
    %vm109 = vmand %vm105, %vm101
    %vm110 = vmand %vm106, %vm102
    %vm111 = vmand %vm107, %vm103
    %v112 = vadd.s32 %v78, 16
    %v113 = vadd.s32 %v85, 16
    %v114 = vadd.s32 %v92, 16
    %v115 = vadd.s32 %v99, 16
    %v116 = vsel %vm108, %v112, %v78
    %v117 = vsel %vm109, %v113, %v85
    %v118 = vsel %vm110, %v114, %v92
    %v119 = vsel %vm111, %v115, %v99
    %vm120 = vcmp.ne.s32.totalorder %v116, 0
    %vm121 = vcmp.ne.s32.totalorder %v117, 0
    %vm122 = vcmp.ne.s32.totalorder %v118, 0
    %vm123 = vcmp.ne.s32.totalorder %v119, 0
    %vm124 = vcmp.ne.s32.totalorder %v116, 15
    %vm125 = vcmp.ne.s32.totalorder %v117, 15
    %vm126 = vcmp.ne.s32.totalorder %v118, 15
    %vm127 = vcmp.ne.s32.totalorder %v119, 15
    %vm132 = vcmask 1040384
    %v133 = vrot.slane %v63, 7
    %v134 = vrot.slane %v64, 7
    %v135 = vsel %vm132, %v133, %v134
    %v136 = vrot.slane %v65, 7
    %v137 = vsel %vm132, %v134, %v136
    %v138 = vrot.slane %v66, 7
    %v139 = vsel %vm132, %v136, %v138
    %v144 = vsel %vm132, 0.0, %v133
    %vm145 = vcmask 1046528
    %v146 = vrot.slane %v63, 1
    %v147 = vrot.slane %v64, 1
    %v148 = vsel %vm145, %v146, %v147
    %v149 = vrot.slane %v65, 1
    %v150 = vsel %vm145, %v147, %v149
    %v151 = vrot.slane %v66, 1
    %v152 = vsel %vm145, %v149, %v151
    %v157 = vsel %vm145, %v151, 0.0
    %v158 = vsel %vm120, 1, 0
    %v159 = vsel %vm121, 1, 0
    %v160 = vsel %vm122, 1, 0
    %v161 = vsel %vm123, 1, 0
    %vm162 = vcmp.eq.s32.totalorder %v158, 1
    %vm163 = vcmp.eq.s32.totalorder %v159, 1
    %vm164 = vcmp.eq.s32.totalorder %v160, 1
    %vm165 = vcmp.eq.s32.totalorder %v161, 1
    %v166 = vsel %vm162, %v144, 0.0
    %v167 = vsel %vm163, %v135, 0.0
    %v168 = vsel %vm164, %v137, 0.0
    %v169 = vsel %vm165, %v139, 0.0
    %v170 = vsel %vm124, 1, 0
    %v171 = vsel %vm125, 1, 0
    %v172 = vsel %vm126, 1, 0
    %v173 = vsel %vm127, 1, 0
    %vm174 = vcmp.eq.s32.totalorder %v170, 1
    %vm175 = vcmp.eq.s32.totalorder %v171, 1
    %vm176 = vcmp.eq.s32.totalorder %v172, 1
    %vm177 = vcmp.eq.s32.totalorder %v173, 1
    %v178 = vsel %vm174, %v148, 0.0
    %v179 = vsel %vm175, %v150, 0.0
    %v180 = vsel %vm176, %v152, 0.0
    %v181 = vsel %vm177, %v157, 0.0
    %v182 = vpack.c.bf16 %v167, %v166
    %v183 = vpack.c.bf16 %v64, %v63
    %v184 = vpack.c.bf16 %v179, %v178
    %v185 = vpack.c.bf16 %v169, %v168
    %v186 = vpack.c.bf16 %v66, %v65
    %v187 = vpack.c.bf16 %v181, %v180
    %v188 = vld [vmem:[#allocation5] sm:$0xff]
    %v189 = vld [vmem:[#allocation5 + $0x8] sm:$0xff]
    %v190 = vld [vmem:[#allocation5 + $0x10] sm:$0xff]
    %v191 = vld [vmem:[#allocation5 + $0x18] sm:$0xff]
    %v192 = vld [vmem:[#allocation5 + $0x20] sm:$0xff]
    %v193 = vld [vmem:[#allocation5 + $0x28] sm:$0xff]
    %v194 = vld [vmem:[#allocation5 + $0x30] sm:$0xff]
    %v195 = vld [vmem:[#allocation5 + $0x38] sm:$0xff]
    %v196 = vld [vmem:[#allocation5 + $0x40] sm:$0xff]
    %v197 = vld [vmem:[#allocation5 + $0x48] sm:$0xff]
    %v198 = vld [vmem:[#allocation5 + $0x50] sm:$0xff]
    %v199 = vld [vmem:[#allocation5 + $0x58] sm:$0xff]
    %v200 = vld [vmem:[#allocation5 + $0x60] sm:$0xff]
    %v201 = vld [vmem:[#allocation5 + $0x68] sm:$0xff]
    %v202 = vld [vmem:[#allocation5 + $0x70] sm:$0xff]
    %v203 = vld [vmem:[#allocation5 + $0x78] sm:$0xff]
    %v204 = vld [vmem:[#allocation5 + $0x80] sm:$0xff]
    %v205 = vld [vmem:[#allocation5 + $0x88] sm:$0xff]
    %v206 = vld [vmem:[#allocation5 + $0x90] sm:$0xff]
    %v207 = vld [vmem:[#allocation5 + $0x98] sm:$0xff]
    %v208 = vld [vmem:[#allocation5 + $0xa0] sm:$0xff]
    %v209 = vld [vmem:[#allocation5 + $0xa8] sm:$0xff]
    %v210 = vld [vmem:[#allocation5 + $0xb0] sm:$0xff]
    %v211 = vld [vmem:[#allocation5 + $0xb8] sm:$0xff]
    %v212 = vld [vmem:[#allocation5 + $0xc0] sm:$0xff]
    %v213 = vld [vmem:[#allocation5 + $0xc8] sm:$0xff]
    %v214 = vld [vmem:[#allocation5 + $0xd0] sm:$0xff]
    %v215 = vld [vmem:[#allocation5 + $0xd8] sm:$0xff]
    %v216 = vld [vmem:[#allocation5 + $0xe0] sm:$0xff]
    %v217 = vld [vmem:[#allocation5 + $0xe8] sm:$0xff]
    %v218 = vld [vmem:[#allocation5 + $0xf0] sm:$0xff]
    %v219 = vld [vmem:[#allocation5 + $0xf8] sm:$0xff]
    %v220 = vld [vmem:[#allocation5 + $0x100] sm:$0xff]
    %v221 = vld [vmem:[#allocation5 + $0x108] sm:$0xff]
    %v222 = vld [vmem:[#allocation5 + $0x110] sm:$0xff]
    %v223 = vld [vmem:[#allocation5 + $0x118] sm:$0xff]
    %v224 = vld [vmem:[#allocation5 + $0x120] sm:$0xff]
    %v225 = vld [vmem:[#allocation5 + $0x128] sm:$0xff]
    %v226 = vld [vmem:[#allocation5 + $0x130] sm:$0xff]
    %v227 = vld [vmem:[#allocation5 + $0x138] sm:$0xff]
    %v228 = vld [vmem:[#allocation5 + $0x140] sm:$0xff]
    %v229 = vld [vmem:[#allocation5 + $0x148] sm:$0xff]
    %v230 = vld [vmem:[#allocation5 + $0x150] sm:$0xff]
    %v231 = vld [vmem:[#allocation5 + $0x158] sm:$0xff]
    %v232 = vld [vmem:[#allocation5 + $0x160] sm:$0xff]
    %v233 = vld [vmem:[#allocation5 + $0x168] sm:$0xff]
    %v234 = vld [vmem:[#allocation5 + $0x170] sm:$0xff]
    %v235 = vld [vmem:[#allocation5 + $0x178] sm:$0xff]
    %v236 = vld [vmem:[%s2] sm:$0x3]
    %v238 = vlaneseq
    %v239 = vshrl.u32 %v238, 7
    %v240 = vsub.s32 0, %v239
    %v241 = vrot.slane %v236, %v240
    %v242 = vlaneseq
    %v243 = vshrl.u32 %v242, 7
    %v244 = vsub.s32 1, %v243
    %v245 = vrot.slane %v236, %v244
    %v296 = vunpack.c.l.b16 %v188
    %v297 = vunpack.c.h.b16 %v188
    %v298 = vunpack.c.l.b16 %v189
    %v299 = vunpack.c.h.b16 %v189
    %v300 = vunpack.c.l.b16 %v190
    %v301 = vunpack.c.h.b16 %v190
    %v302 = vunpack.c.l.b16 %v191
    %v303 = vunpack.c.h.b16 %v191
    %v304 = vunpack.c.l.b16 %v192
    %v305 = vunpack.c.h.b16 %v192
    %v306 = vunpack.c.l.b16 %v193
    %v307 = vunpack.c.h.b16 %v193
    %v308 = vunpack.c.l.b16 %v194
    %v309 = vunpack.c.h.b16 %v194
    %v310 = vunpack.c.l.b16 %v195
    %v311 = vunpack.c.h.b16 %v195
    %v312 = vunpack.c.l.b16 %v196
    %v313 = vunpack.c.h.b16 %v196
    %v314 = vunpack.c.l.b16 %v197
    %v315 = vunpack.c.h.b16 %v197
    %v316 = vunpack.c.l.b16 %v198
    %v317 = vunpack.c.h.b16 %v198
    %v318 = vunpack.c.l.b16 %v199
    %v319 = vunpack.c.h.b16 %v199
    %v320 = vunpack.c.l.b16 %v200
    %v321 = vunpack.c.h.b16 %v200
    %v322 = vunpack.c.l.b16 %v201
    %v323 = vunpack.c.h.b16 %v201
    %v324 = vunpack.c.l.b16 %v202
    %v325 = vunpack.c.h.b16 %v202
    %v326 = vunpack.c.l.b16 %v203
    %v327 = vunpack.c.h.b16 %v203
    %v328 = vunpack.c.l.b16 %v204
    %v329 = vunpack.c.h.b16 %v204
    %v330 = vunpack.c.l.b16 %v205
    %v331 = vunpack.c.h.b16 %v205
    %v332 = vunpack.c.l.b16 %v206
    %v333 = vunpack.c.h.b16 %v206
    %v334 = vunpack.c.l.b16 %v207
    %v335 = vunpack.c.h.b16 %v207
    %v336 = vunpack.c.l.b16 %v208
    %v337 = vunpack.c.h.b16 %v208
    %v338 = vunpack.c.l.b16 %v209
    %v339 = vunpack.c.h.b16 %v209
    %v340 = vunpack.c.l.b16 %v210
    %v341 = vunpack.c.h.b16 %v210
    %v342 = vunpack.c.l.b16 %v211
    %v343 = vunpack.c.h.b16 %v211
    %v344 = vunpack.c.l.b16 %v212
    %v345 = vunpack.c.h.b16 %v212
    %v346 = vunpack.c.l.b16 %v213
    %v347 = vunpack.c.h.b16 %v213
    %v348 = vunpack.c.l.b16 %v214
    %v349 = vunpack.c.h.b16 %v214
    %v350 = vunpack.c.l.b16 %v215
    %v351 = vunpack.c.h.b16 %v215
    %v352 = vunpack.c.l.b16 %v216
    %v353 = vunpack.c.h.b16 %v216
    %v354 = vunpack.c.l.b16 %v217
    %v355 = vunpack.c.h.b16 %v217
    %v356 = vunpack.c.l.b16 %v218
    %v357 = vunpack.c.h.b16 %v218
    %v358 = vunpack.c.l.b16 %v219
    %v359 = vunpack.c.h.b16 %v219
    %v360 = vunpack.c.l.b16 %v220
    %v361 = vunpack.c.h.b16 %v220
    %v362 = vunpack.c.l.b16 %v221
    %v363 = vunpack.c.h.b16 %v221
    %v364 = vunpack.c.l.b16 %v222
    %v365 = vunpack.c.h.b16 %v222
    %v366 = vunpack.c.l.b16 %v223
    %v367 = vunpack.c.h.b16 %v223
    %v368 = vunpack.c.l.b16 %v224
    %v369 = vunpack.c.h.b16 %v224
    %v370 = vunpack.c.l.b16 %v225
    %v371 = vunpack.c.h.b16 %v225
    %v372 = vunpack.c.l.b16 %v226
    %v373 = vunpack.c.h.b16 %v226
    %v374 = vunpack.c.l.b16 %v227
    %v375 = vunpack.c.h.b16 %v227
    %v376 = vunpack.c.l.b16 %v228
    %v377 = vunpack.c.h.b16 %v228
    %v378 = vunpack.c.l.b16 %v229
    %v379 = vunpack.c.h.b16 %v229
    %v380 = vunpack.c.l.b16 %v230
    %v381 = vunpack.c.h.b16 %v230
    %v382 = vunpack.c.l.b16 %v231
    %v383 = vunpack.c.h.b16 %v231
    %v384 = vunpack.c.l.b16 %v232
    %v385 = vunpack.c.h.b16 %v232
    %v386 = vunpack.c.l.b16 %v233
    %v387 = vunpack.c.h.b16 %v233
    %v388 = vunpack.c.l.b16 %v234
    %v389 = vunpack.c.h.b16 %v234
    %v390 = vunpack.c.l.b16 %v235
    %v391 = vunpack.c.h.b16 %v235
    %v392 = vpack.c.b16 %v298, %v296
    %v393 = vpack.c.b16 %v299, %v297
    %v394 = vpack.c.b16 %v302, %v300
    %v395 = vpack.c.b16 %v303, %v301
    %v396 = vpack.c.b16 %v306, %v304
    %v397 = vpack.c.b16 %v307, %v305
    %v398 = vpack.c.b16 %v310, %v308
    %v399 = vpack.c.b16 %v311, %v309
    %v400 = vpack.c.b16 %v314, %v312
    %v401 = vpack.c.b16 %v315, %v313
    %v402 = vpack.c.b16 %v318, %v316
    %v403 = vpack.c.b16 %v319, %v317
    %v404 = vpack.c.b16 %v322, %v320
    %v405 = vpack.c.b16 %v323, %v321
    %v406 = vpack.c.b16 %v326, %v324
    %v407 = vpack.c.b16 %v327, %v325
    %v408 = vpack.c.b16 %v330, %v328
    %v409 = vpack.c.b16 %v331, %v329
    %v410 = vpack.c.b16 %v334, %v332
    %v411 = vpack.c.b16 %v335, %v333
    %v412 = vpack.c.b16 %v338, %v336
    %v413 = vpack.c.b16 %v339, %v337
    %v414 = vpack.c.b16 %v342, %v340
    %v415 = vpack.c.b16 %v343, %v341
    %v416 = vpack.c.b16 %v346, %v344
    %v417 = vpack.c.b16 %v347, %v345
    %v418 = vpack.c.b16 %v350, %v348
    %v419 = vpack.c.b16 %v351, %v349
    %v420 = vpack.c.b16 %v354, %v352
    %v421 = vpack.c.b16 %v355, %v353
    %v422 = vpack.c.b16 %v358, %v356
    %v423 = vpack.c.b16 %v359, %v357
    %v424 = vpack.c.b16 %v362, %v360
    %v425 = vpack.c.b16 %v363, %v361
    %v426 = vpack.c.b16 %v366, %v364
    %v427 = vpack.c.b16 %v367, %v365
    %v428 = vpack.c.b16 %v370, %v368
    %v429 = vpack.c.b16 %v371, %v369
    %v430 = vpack.c.b16 %v374, %v372
    %v431 = vpack.c.b16 %v375, %v373
    %v432 = vpack.c.b16 %v378, %v376
    %v433 = vpack.c.b16 %v379, %v377
    %v434 = vpack.c.b16 %v382, %v380
    %v435 = vpack.c.b16 %v383, %v381
    %v436 = vpack.c.b16 %v386, %v384
    %v437 = vpack.c.b16 %v387, %v385
    %v438 = vpack.c.b16 %v390, %v388
    %v439 = vpack.c.b16 %v391, %v389
    %488 = vmatprep.subr.bf16.mxu0 %v393
    %489 = vmatpush1.bf16.msra.mxu0 %v392
    %490 = vmatprep.subr.bf16.mxu0 %v395
    %491 = vmatpush1.bf16.msra.mxu0 %v394
    %492 = vmatprep.subr.bf16.mxu0 %v397
    %493 = vmatpush1.bf16.msra.mxu0 %v396
    %494 = vmatprep.subr.bf16.mxu0 %v399
    %495 = vmatpush1.bf16.msra.mxu0 %v398
    %496 = vmatprep.subr.bf16.mxu0 %v401
    %497 = vmatpush1.bf16.msra.mxu0 %v400
    %498 = vmatprep.subr.bf16.mxu0 %v403
    %499 = vmatpush1.bf16.msra.mxu0 %v402
    %500 = vmatprep.subr.bf16.mxu0 %v405
    %501 = vmatpush1.bf16.msra.mxu0 %v404
    %502 = vmatprep.subr.bf16.mxu0 %v407
    %503 = vmatpush1.bf16.msra.mxu0 %v406
    %504 = vmatprep.subr.bf16.mxu0 %v409
    %505 = vmatpush1.bf16.msra.mxu0 %v408
    %506 = vmatprep.subr.bf16.mxu0 %v411
    %507 = vmatpush1.bf16.msra.mxu0 %v410
    %508 = vmatprep.subr.bf16.mxu0 %v413
    %509 = vmatpush1.bf16.msra.mxu0 %v412
    %510 = vmatprep.subr.bf16.mxu0 %v415
    %511 = vmatpush1.bf16.msra.mxu0 %v414
    %512 = vmatprep.subr.bf16.mxu0 %v417
    %513 = vmatpush1.bf16.msra.mxu0 %v416
    %514 = vmatprep.subr.bf16.mxu0 %v419
    %515 = vmatpush1.bf16.msra.mxu0 %v418
    %516 = vmatprep.subr.bf16.mxu0 %v421
    %517 = vmatpush1.bf16.msra.mxu0 %v420
    %518 = vmatprep.subr.bf16.mxu0 %v423
    %519 = vmatpush1.bf16.msra.mxu0 %v422
    %520 = vmatprep.mubr.bf16.mxu0 %v183
    %521 = vmatmul.mubr.bf16.gmra.mrb[0].mxu0 %v182
    %v522 = vpop.f32.mrb[0].mxu0
    %v523 = vadd.f32 %v241, %v522
    %v524 = vpop.f32.mrb[0].mxu0
    %v525 = vadd.f32 %v245, %v524
    %v526 = vpop.f32.mrb[0].mxu0
    %v527 = vadd.f32 %v241, %v526
    %v528 = vpop.f32.mrb[0].mxu0
    %v529 = vadd.f32 %v245, %v528
    %530 = vmatprep.mubr.bf16.mxu0 %v186
    %531 = vmatmul.mubr.bf16.gmra.mrb[0].mxu0 %v185
    %v532 = vpop.f32.mrb[0].mxu0
    %v533 = vadd.f32 %v241, %v532
    %v534 = vpop.f32.mrb[0].mxu0
    %v535 = vadd.f32 %v245, %v534
    %v536 = vpop.f32.mrb[0].mxu0
    %v537 = vadd.f32 %v241, %v536
    %v538 = vpop.f32.mrb[0].mxu0
    %v539 = vadd.f32 %v245, %v538
    %540 = vdwg.mxu0
    %541 = vmatprep.subr.bf16.mxu0 %v425
    %542 = vmatpush1.bf16.msra.mxu0 %v424
    %543 = vmatprep.subr.bf16.mxu0 %v427
    %544 = vmatpush1.bf16.msra.mxu0 %v426
    %545 = vmatprep.subr.bf16.mxu0 %v429
    %546 = vmatpush1.bf16.msra.mxu0 %v428
    %547 = vmatprep.subr.bf16.mxu0 %v431
    %548 = vmatpush1.bf16.msra.mxu0 %v430
    %549 = vmatprep.subr.bf16.mxu0 %v433
    %550 = vmatpush1.bf16.msra.mxu0 %v432
    %551 = vmatprep.subr.bf16.mxu0 %v435
    %552 = vmatpush1.bf16.msra.mxu0 %v434
    %553 = vmatprep.subr.bf16.mxu0 %v437
    %554 = vmatpush1.bf16.msra.mxu0 %v436
    %555 = vmatprep.subr.bf16.mxu0 %v439
    %556 = vmatpush1.bf16.msra.mxu0 %v438
    %557 = vmatprep.subr.bf16.mxu0 0
    %558 = vmatpush1.bf16.msra.mxu0 0
    %559 = vmatprep.subr.bf16.mxu0 0
    %560 = vmatpush1.bf16.msra.mxu0 0
    %561 = vmatprep.subr.bf16.mxu0 0
    %562 = vmatpush1.bf16.msra.mxu0 0
    %563 = vmatprep.subr.bf16.mxu0 0
    %564 = vmatpush1.bf16.msra.mxu0 0
    %565 = vmatprep.subr.bf16.mxu0 0
    %566 = vmatpush1.bf16.msra.mxu0 0
    %567 = vmatprep.subr.bf16.mxu0 0
    %568 = vmatpush1.bf16.msra.mxu0 0
    %569 = vmatprep.subr.bf16.mxu0 0
    %570 = vmatpush1.bf16.msra.mxu0 0
    %571 = vmatprep.subr.bf16.mxu0 0
    %572 = vmatpush1.bf16.msra.mxu0 0
    %573 = vmatprep.mubr.bf16.mxu0 0
    %574 = vmatmul.mubr.bf16.gmra.mrb[0].mxu0 %v184
    %v575 = vpop.f32.mrb[0].mxu0
    %v576 = vadd.f32 %v523, %v575
    %v577 = vpop.f32.mrb[0].mxu0
    %v578 = vadd.f32 %v525, %v577
    %v579 = vpop.f32.mrb[0].mxu0
    %v580 = vadd.f32 %v527, %v579
    %v581 = vpop.f32.mrb[0].mxu0
    %v582 = vadd.f32 %v529, %v581
    %583 = vmatprep.mubr.bf16.mxu0 0
    %584 = vmatmul.mubr.bf16.gmra.mrb[0].mxu0 %v187
    %v585 = vpop.f32.mrb[0].mxu0
    %v586 = vadd.f32 %v533, %v585
    %v587 = vpop.f32.mrb[0].mxu0
    %v588 = vadd.f32 %v535, %v587
    %v589 = vpop.f32.mrb[0].mxu0
    %v590 = vadd.f32 %v537, %v589
    %v591 = vpop.f32.mrb[0].mxu0
    %v592 = vadd.f32 %v539, %v591
    %593 = vdwg.mxu0
    %v594 = vxor.u32 %v576, 2147483648
    %v595 = vxor.u32 %v578, 2147483648
    %v596 = vxor.u32 %v580, 2147483648
    %v597 = vxor.u32 %v582, 2147483648
    %v598 = vxor.u32 %v586, 2147483648
    %v599 = vxor.u32 %v588, 2147483648
    %v600 = vxor.u32 %v590, 2147483648
    %v601 = vxor.u32 %v592, 2147483648
    %v602 = vmul.f32 %v594, 1.442695
    %v603 = vpow.pop %v602
    %v604 = vmul.f32 %v595, 1.442695
    %v605 = vpow.pop %v604
    %v606 = vmul.f32 %v596, 1.442695
    %v607 = vpow.pop %v606
    %v608 = vmul.f32 %v597, 1.442695
    %v609 = vpow.pop %v608
    %v610 = vmul.f32 %v598, 1.442695
    %v611 = vpow.pop %v610
    %v612 = vmul.f32 %v599, 1.442695
    %v613 = vpow.pop %v612
    %v614 = vmul.f32 %v600, 1.442695
    %v615 = vpow.pop %v614
    %v616 = vmul.f32 %v601, 1.442695
    %v617 = vpow.pop %v616
    %v618 = vadd.f32 %v603, 1.0
    %v619 = vadd.f32 %v605, 1.0
    %v620 = vadd.f32 %v607, 1.0
    %v621 = vadd.f32 %v609, 1.0
    %v622 = vadd.f32 %v611, 1.0
    %v623 = vadd.f32 %v613, 1.0
    %v624 = vadd.f32 %v615, 1.0
    %v625 = vadd.f32 %v617, 1.0
    %v626 = vrcp.pop %v618
    %v627 = vmul.f32 1.0, %v626
    %v628 = vrcp.pop %v619
    %v629 = vmul.f32 1.0, %v628
    %v630 = vrcp.pop %v620
    %v631 = vmul.f32 1.0, %v630
    %v632 = vrcp.pop %v621
    %v633 = vmul.f32 1.0, %v632
    %v634 = vrcp.pop %v622
    %v635 = vmul.f32 1.0, %v634
    %v636 = vrcp.pop %v623
    %v637 = vmul.f32 1.0, %v636
    %v638 = vrcp.pop %v624
    %v639 = vmul.f32 1.0, %v638
    %v640 = vrcp.pop %v625
    %v641 = vmul.f32 1.0, %v640
    %v642 = vmul.f32 %v576, %v627
    %v643 = vmul.f32 %v578, %v629
    %v644 = vmul.f32 %v580, %v631
    %v645 = vmul.f32 %v582, %v633
    %v646 = vmul.f32 %v586, %v635
    %v647 = vmul.f32 %v588, %v637
    %v648 = vmul.f32 %v590, %v639
    %v649 = vmul.f32 %v592, %v641
    %v658 = vrot.slane %v642, 7
    %v659 = vrot.slane %v643, 7
    %v660 = vrot.slane %v644, 7
    %v661 = vsel %vm132, %v658, %v660
    %v662 = vrot.slane %v645, 7
    %v663 = vsel %vm132, %v659, %v662
    %v664 = vrot.slane %v646, 7
    %v665 = vsel %vm132, %v660, %v664
    %v666 = vrot.slane %v647, 7
    %v667 = vsel %vm132, %v662, %v666
    %v668 = vrot.slane %v648, 7
    %v669 = vsel %vm132, %v664, %v668
    %v670 = vrot.slane %v649, 7
    %v671 = vsel %vm132, %v666, %v670
    %v680 = vsel %vm132, 0.0, %v658
    %v681 = vsel %vm132, 0.0, %v659
    %v682 = vrot.slane %v642, 1
    %v683 = vrot.slane %v644, 1
    %v684 = vsel %vm145, %v682, %v683
    %v685 = vrot.slane %v643, 1
    %v686 = vrot.slane %v645, 1
    %v687 = vsel %vm145, %v685, %v686
    %v688 = vrot.slane %v646, 1
    %v689 = vsel %vm145, %v683, %v688
    %v690 = vrot.slane %v647, 1
    %v691 = vsel %vm145, %v686, %v690
    %v692 = vrot.slane %v648, 1
    %v693 = vsel %vm145, %v688, %v692
    %v694 = vrot.slane %v649, 1
    %v695 = vsel %vm145, %v690, %v694
    %v704 = vsel %vm145, %v692, 0.0
    %v705 = vsel %vm145, %v694, 0.0
    %v706 = vsel %vm162, %v680, 0.0
    %v707 = vsel %vm162, %v681, 0.0
    %v708 = vsel %vm163, %v661, 0.0
    %v709 = vsel %vm163, %v663, 0.0
    %v710 = vsel %vm164, %v665, 0.0
    %v711 = vsel %vm164, %v667, 0.0
    %v712 = vsel %vm165, %v669, 0.0
    %v713 = vsel %vm165, %v671, 0.0
    %v714 = vsel %vm174, %v684, 0.0
    %v715 = vsel %vm174, %v687, 0.0
    %v716 = vsel %vm175, %v689, 0.0
    %v717 = vsel %vm175, %v691, 0.0
    %v718 = vsel %vm176, %v693, 0.0
    %v719 = vsel %vm176, %v695, 0.0
    %v720 = vsel %vm177, %v704, 0.0
    %v721 = vsel %vm177, %v705, 0.0
    %v722 = vpack.c.bf16 %v708, %v706
    %v723 = vpack.c.bf16 %v709, %v707
    %v724 = vpack.c.bf16 %v644, %v642
    %v725 = vpack.c.bf16 %v645, %v643
    %v726 = vpack.c.bf16 %v716, %v714
    %v727 = vpack.c.bf16 %v717, %v715
    %v728 = vpack.c.bf16 %v712, %v710
    %v729 = vpack.c.bf16 %v713, %v711
    %v730 = vpack.c.bf16 %v648, %v646
    %v731 = vpack.c.bf16 %v649, %v647
    %v732 = vpack.c.bf16 %v720, %v718
    %v733 = vpack.c.bf16 %v721, %v719
    %v734 = vld [vmem:[#allocation7] sm:$0xf]
    %v735 = vld [vmem:[#allocation7 + $0x4] sm:$0xf]
    %v736 = vld [vmem:[#allocation7 + $0x8] sm:$0xf]
    %v737 = vld [vmem:[#allocation7 + $0xc] sm:$0xf]
    %v738 = vld [vmem:[#allocation7 + $0x10] sm:$0xf]
    %v739 = vld [vmem:[#allocation7 + $0x14] sm:$0xf]
    %v740 = vld [vmem:[#allocation7 + $0x18] sm:$0xf]
    %v741 = vld [vmem:[#allocation7 + $0x1c] sm:$0xf]
    %v742 = vld [vmem:[#allocation7 + $0x20] sm:$0xf]
    %v743 = vld [vmem:[#allocation7 + $0x24] sm:$0xf]
    %v744 = vld [vmem:[#allocation7 + $0x28] sm:$0xf]
    %v745 = vld [vmem:[#allocation7 + $0x2c] sm:$0xf]
    %v746 = vld [vmem:[#allocation7 + $0x30] sm:$0xf]
    %v747 = vld [vmem:[#allocation7 + $0x34] sm:$0xf]
    %v748 = vld [vmem:[#allocation7 + $0x38] sm:$0xf]
    %v749 = vld [vmem:[#allocation7 + $0x3c] sm:$0xf]
    %v750 = vld [vmem:[#allocation7 + $0x40] sm:$0xf]
    %v751 = vld [vmem:[#allocation7 + $0x44] sm:$0xf]
    %v752 = vld [vmem:[#allocation7 + $0x48] sm:$0xf]
    %v753 = vld [vmem:[#allocation7 + $0x4c] sm:$0xf]
    %v754 = vld [vmem:[#allocation7 + $0x50] sm:$0xf]
    %v755 = vld [vmem:[#allocation7 + $0x54] sm:$0xf]
    %v756 = vld [vmem:[#allocation7 + $0x58] sm:$0xf]
    %v757 = vld [vmem:[#allocation7 + $0x5c] sm:$0xf]
    %v758 = vld [vmem:[#allocation7 + $0x60] sm:$0xf]
    %v759 = vld [vmem:[#allocation7 + $0x64] sm:$0xf]
    %v760 = vld [vmem:[#allocation7 + $0x68] sm:$0xf]
    %v761 = vld [vmem:[#allocation7 + $0x6c] sm:$0xf]
    %v762 = vld [vmem:[#allocation7 + $0x70] sm:$0xf]
    %v763 = vld [vmem:[#allocation7 + $0x74] sm:$0xf]
    %v764 = vld [vmem:[#allocation7 + $0x78] sm:$0xf]
    %v765 = vld [vmem:[#allocation7 + $0x7c] sm:$0xf]
    %v766 = vld [vmem:[#allocation7 + $0x80] sm:$0xf]
    %v767 = vld [vmem:[#allocation7 + $0x84] sm:$0xf]
    %v768 = vld [vmem:[#allocation7 + $0x88] sm:$0xf]
    %v769 = vld [vmem:[#allocation7 + $0x8c] sm:$0xf]
    %v770 = vld [vmem:[#allocation7 + $0x90] sm:$0xf]
    %v771 = vld [vmem:[#allocation7 + $0x94] sm:$0xf]
    %v772 = vld [vmem:[#allocation7 + $0x98] sm:$0xf]
    %v773 = vld [vmem:[#allocation7 + $0x9c] sm:$0xf]
    %v774 = vld [vmem:[#allocation7 + $0xa0] sm:$0xf]
    %v775 = vld [vmem:[#allocation7 + $0xa4] sm:$0xf]
    %v776 = vld [vmem:[#allocation7 + $0xa8] sm:$0xf]
    %v777 = vld [vmem:[#allocation7 + $0xac] sm:$0xf]
    %v778 = vld [vmem:[#allocation7 + $0xb0] sm:$0xf]
    %v779 = vld [vmem:[#allocation7 + $0xb4] sm:$0xf]
    %v780 = vld [vmem:[#allocation7 + $0xb8] sm:$0xf]
    %v781 = vld [vmem:[#allocation7 + $0xbc] sm:$0xf]
    %v782 = vld [vmem:[#allocation7 + $0xc0] sm:$0xf]
    %v783 = vld [vmem:[#allocation7 + $0xc4] sm:$0xf]
    %v784 = vld [vmem:[#allocation7 + $0xc8] sm:$0xf]
    %v785 = vld [vmem:[#allocation7 + $0xcc] sm:$0xf]
    %v786 = vld [vmem:[#allocation7 + $0xd0] sm:$0xf]
    %v787 = vld [vmem:[#allocation7 + $0xd4] sm:$0xf]
    %v788 = vld [vmem:[#allocation7 + $0xd8] sm:$0xf]
    %v789 = vld [vmem:[#allocation7 + $0xdc] sm:$0xf]
    %v790 = vld [vmem:[#allocation7 + $0xe0] sm:$0xf]
    %v791 = vld [vmem:[#allocation7 + $0xe4] sm:$0xf]
    %v792 = vld [vmem:[#allocation7 + $0xe8] sm:$0xf]
    %v793 = vld [vmem:[#allocation7 + $0xec] sm:$0xf]
    %v794 = vld [vmem:[#allocation7 + $0xf0] sm:$0xf]
    %v795 = vld [vmem:[#allocation7 + $0xf4] sm:$0xf]
    %v796 = vld [vmem:[#allocation7 + $0xf8] sm:$0xf]
    %v797 = vld [vmem:[#allocation7 + $0xfc] sm:$0xf]
    %v798 = vld [vmem:[#allocation7 + $0x100] sm:$0xf]
    %v799 = vld [vmem:[#allocation7 + $0x104] sm:$0xf]
    %v800 = vld [vmem:[#allocation7 + $0x108] sm:$0xf]
    %v801 = vld [vmem:[#allocation7 + $0x10c] sm:$0xf]
    %v802 = vld [vmem:[#allocation7 + $0x110] sm:$0xf]
    %v803 = vld [vmem:[#allocation7 + $0x114] sm:$0xf]
    %v804 = vld [vmem:[#allocation7 + $0x118] sm:$0xf]
    %v805 = vld [vmem:[#allocation7 + $0x11c] sm:$0xf]
    %v806 = vld [vmem:[#allocation7 + $0x120] sm:$0xf]
    %v807 = vld [vmem:[#allocation7 + $0x124] sm:$0xf]
    %v808 = vld [vmem:[#allocation7 + $0x128] sm:$0xf]
    %v809 = vld [vmem:[#allocation7 + $0x12c] sm:$0xf]
    %v810 = vld [vmem:[#allocation7 + $0x130] sm:$0xf]
    %v811 = vld [vmem:[#allocation7 + $0x134] sm:$0xf]
    %v812 = vld [vmem:[#allocation7 + $0x138] sm:$0xf]
    %v813 = vld [vmem:[#allocation7 + $0x13c] sm:$0xf]
    %v814 = vld [vmem:[#allocation7 + $0x140] sm:$0xf]
    %v815 = vld [vmem:[#allocation7 + $0x144] sm:$0xf]
    %v816 = vld [vmem:[#allocation7 + $0x148] sm:$0xf]
    %v817 = vld [vmem:[#allocation7 + $0x14c] sm:$0xf]
    %v818 = vld [vmem:[#allocation7 + $0x150] sm:$0xf]
    %v819 = vld [vmem:[#allocation7 + $0x154] sm:$0xf]
    %v820 = vld [vmem:[#allocation7 + $0x158] sm:$0xf]
    %v821 = vld [vmem:[#allocation7 + $0x15c] sm:$0xf]
    %v822 = vld [vmem:[#allocation7 + $0x160] sm:$0xf]
    %v823 = vld [vmem:[#allocation7 + $0x164] sm:$0xf]
    %v824 = vld [vmem:[#allocation7 + $0x168] sm:$0xf]
    %v825 = vld [vmem:[#allocation7 + $0x16c] sm:$0xf]
    %v826 = vld [vmem:[#allocation7 + $0x170] sm:$0xf]
    %v827 = vld [vmem:[#allocation7 + $0x174] sm:$0xf]
    %v828 = vld [vmem:[#allocation7 + $0x178] sm:$0xf]
    %v829 = vld [vmem:[#allocation7 + $0x17c] sm:$0xf]
    %v830 = vld [vmem:[%s4] sm:$0x1]
    %v832 = vlaneseq
    %v833 = vshrl.u32 %v832, 7
    %v834 = vsub.s32 0, %v833
    %v835 = vrot.slane %v830, %v834
    %v933 = vunpack.c.l.b16 %v734
    %v934 = vunpack.c.l.b16 %v735
    %v935 = vunpack.c.l.b16 %v736
    %v936 = vunpack.c.l.b16 %v737
    %v937 = vunpack.c.l.b16 %v738
    %v938 = vunpack.c.l.b16 %v739
    %v939 = vunpack.c.l.b16 %v740
    %v940 = vunpack.c.l.b16 %v741
    %v941 = vunpack.c.l.b16 %v742
    %v942 = vunpack.c.l.b16 %v743
    %v943 = vunpack.c.l.b16 %v744
    %v944 = vunpack.c.l.b16 %v745
    %v945 = vunpack.c.l.b16 %v746
    %v946 = vunpack.c.l.b16 %v747
    %v947 = vunpack.c.l.b16 %v748
    %v948 = vunpack.c.l.b16 %v749
    %v949 = vunpack.c.l.b16 %v750
    %v950 = vunpack.c.l.b16 %v751
    %v951 = vunpack.c.l.b16 %v752
    %v952 = vunpack.c.l.b16 %v753
    %v953 = vunpack.c.l.b16 %v754
    %v954 = vunpack.c.l.b16 %v755
    %v955 = vunpack.c.l.b16 %v756
    %v956 = vunpack.c.l.b16 %v757
    %v957 = vunpack.c.l.b16 %v758
    %v958 = vunpack.c.l.b16 %v759
    %v959 = vunpack.c.l.b16 %v760
    %v960 = vunpack.c.l.b16 %v761
    %v961 = vunpack.c.l.b16 %v762
    %v962 = vunpack.c.l.b16 %v763
    %v963 = vunpack.c.l.b16 %v764
    %v964 = vunpack.c.l.b16 %v765
    %v965 = vunpack.c.l.b16 %v766
    %v966 = vunpack.c.l.b16 %v767
    %v967 = vunpack.c.l.b16 %v768
    %v968 = vunpack.c.l.b16 %v769
    %v969 = vunpack.c.l.b16 %v770
    %v970 = vunpack.c.l.b16 %v771
    %v971 = vunpack.c.l.b16 %v772
    %v972 = vunpack.c.l.b16 %v773
    %v973 = vunpack.c.l.b16 %v774
    %v974 = vunpack.c.l.b16 %v775
    %v975 = vunpack.c.l.b16 %v776
    %v976 = vunpack.c.l.b16 %v777
    %v977 = vunpack.c.l.b16 %v778
    %v978 = vunpack.c.l.b16 %v779
    %v979 = vunpack.c.l.b16 %v780
    %v980 = vunpack.c.l.b16 %v781
    %v981 = vunpack.c.l.b16 %v782
    %v982 = vunpack.c.l.b16 %v783
    %v983 = vunpack.c.l.b16 %v784
    %v984 = vunpack.c.l.b16 %v785
    %v985 = vunpack.c.l.b16 %v786
    %v986 = vunpack.c.l.b16 %v787
    %v987 = vunpack.c.l.b16 %v788
    %v988 = vunpack.c.l.b16 %v789
    %v989 = vunpack.c.l.b16 %v790
    %v990 = vunpack.c.l.b16 %v791
    %v991 = vunpack.c.l.b16 %v792
    %v992 = vunpack.c.l.b16 %v793
    %v993 = vunpack.c.l.b16 %v794
    %v994 = vunpack.c.l.b16 %v795
    %v995 = vunpack.c.l.b16 %v796
    %v996 = vunpack.c.l.b16 %v797
    %v997 = vunpack.c.l.b16 %v798
    %v998 = vunpack.c.l.b16 %v799
    %v999 = vunpack.c.l.b16 %v800
    %v1000 = vunpack.c.l.b16 %v801
    %v1001 = vunpack.c.l.b16 %v802
    %v1002 = vunpack.c.l.b16 %v803
    %v1003 = vunpack.c.l.b16 %v804
    %v1004 = vunpack.c.l.b16 %v805
    %v1005 = vunpack.c.l.b16 %v806
    %v1006 = vunpack.c.l.b16 %v807
    %v1007 = vunpack.c.l.b16 %v808
    %v1008 = vunpack.c.l.b16 %v809
    %v1009 = vunpack.c.l.b16 %v810
    %v1010 = vunpack.c.l.b16 %v811
    %v1011 = vunpack.c.l.b16 %v812
    %v1012 = vunpack.c.l.b16 %v813
    %v1013 = vunpack.c.l.b16 %v814
    %v1014 = vunpack.c.l.b16 %v815
    %v1015 = vunpack.c.l.b16 %v816
    %v1016 = vunpack.c.l.b16 %v817
    %v1017 = vunpack.c.l.b16 %v818
    %v1018 = vunpack.c.l.b16 %v819
    %v1019 = vunpack.c.l.b16 %v820
    %v1020 = vunpack.c.l.b16 %v821
    %v1021 = vunpack.c.l.b16 %v822
    %v1022 = vunpack.c.l.b16 %v823
    %v1023 = vunpack.c.l.b16 %v824
    %v1024 = vunpack.c.l.b16 %v825
    %v1025 = vunpack.c.l.b16 %v826
    %v1026 = vunpack.c.l.b16 %v827
    %v1027 = vunpack.c.l.b16 %v828
    %v1028 = vunpack.c.l.b16 %v829
    %v1029 = vpack.c.b16 %v934, %v933
    %v1030 = vpack.c.b16 %v936, %v935
    %v1031 = vpack.c.b16 %v938, %v937
    %v1032 = vpack.c.b16 %v940, %v939
    %v1033 = vpack.c.b16 %v942, %v941
    %v1034 = vpack.c.b16 %v944, %v943
    %v1035 = vpack.c.b16 %v946, %v945
    %v1036 = vpack.c.b16 %v948, %v947
    %v1037 = vpack.c.b16 %v950, %v949
    %v1038 = vpack.c.b16 %v952, %v951
    %v1039 = vpack.c.b16 %v954, %v953
    %v1040 = vpack.c.b16 %v956, %v955
    %v1041 = vpack.c.b16 %v958, %v957
    %v1042 = vpack.c.b16 %v960, %v959
    %v1043 = vpack.c.b16 %v962, %v961
    %v1044 = vpack.c.b16 %v964, %v963
    %v1045 = vpack.c.b16 %v966, %v965
    %v1046 = vpack.c.b16 %v968, %v967
    %v1047 = vpack.c.b16 %v970, %v969
    %v1048 = vpack.c.b16 %v972, %v971
    %v1049 = vpack.c.b16 %v974, %v973
    %v1050 = vpack.c.b16 %v976, %v975
    %v1051 = vpack.c.b16 %v978, %v977
    %v1052 = vpack.c.b16 %v980, %v979
    %v1053 = vpack.c.b16 %v982, %v981
    %v1054 = vpack.c.b16 %v984, %v983
    %v1055 = vpack.c.b16 %v986, %v985
    %v1056 = vpack.c.b16 %v988, %v987
    %v1057 = vpack.c.b16 %v990, %v989
    %v1058 = vpack.c.b16 %v992, %v991
    %v1059 = vpack.c.b16 %v994, %v993
    %v1060 = vpack.c.b16 %v996, %v995
    %v1061 = vpack.c.b16 %v998, %v997
    %v1062 = vpack.c.b16 %v1000, %v999
    %v1063 = vpack.c.b16 %v1002, %v1001
    %v1064 = vpack.c.b16 %v1004, %v1003
    %v1065 = vpack.c.b16 %v1006, %v1005
    %v1066 = vpack.c.b16 %v1008, %v1007
    %v1067 = vpack.c.b16 %v1010, %v1009
    %v1068 = vpack.c.b16 %v1012, %v1011
    %v1069 = vpack.c.b16 %v1014, %v1013
    %v1070 = vpack.c.b16 %v1016, %v1015
    %v1071 = vpack.c.b16 %v1018, %v1017
    %v1072 = vpack.c.b16 %v1020, %v1019
    %v1073 = vpack.c.b16 %v1022, %v1021
    %v1074 = vpack.c.b16 %v1024, %v1023
    %v1075 = vpack.c.b16 %v1026, %v1025
    %v1076 = vpack.c.b16 %v1028, %v1027
    %1125 = vmatprep.subr.bf16.mxu0 0
    %1126 = vmatpush1.bf16.msra.mxu0 %v1029
    %1127 = vmatprep.subr.bf16.mxu0 0
    %1128 = vmatpush1.bf16.msra.mxu0 %v1030
    %1129 = vmatprep.subr.bf16.mxu0 0
    %1130 = vmatpush1.bf16.msra.mxu0 %v1031
    %1131 = vmatprep.subr.bf16.mxu0 0
    %1132 = vmatpush1.bf16.msra.mxu0 %v1032
    %1133 = vmatprep.subr.bf16.mxu0 0
    %1134 = vmatpush1.bf16.msra.mxu0 %v1033
    %1135 = vmatprep.subr.bf16.mxu0 0
    %1136 = vmatpush1.bf16.msra.mxu0 %v1034
    %1137 = vmatprep.subr.bf16.mxu0 0
    %1138 = vmatpush1.bf16.msra.mxu0 %v1035
    %1139 = vmatprep.subr.bf16.mxu0 0
    %1140 = vmatpush1.bf16.msra.mxu0 %v1036
    %1141 = vmatprep.subr.bf16.mxu0 0
    %1142 = vmatpush1.bf16.msra.mxu0 %v1037
    %1143 = vmatprep.subr.bf16.mxu0 0
    %1144 = vmatpush1.bf16.msra.mxu0 %v1038
    %1145 = vmatprep.subr.bf16.mxu0 0
    %1146 = vmatpush1.bf16.msra.mxu0 %v1039
    %1147 = vmatprep.subr.bf16.mxu0 0
    %1148 = vmatpush1.bf16.msra.mxu0 %v1040
    %1149 = vmatprep.subr.bf16.mxu0 0
    %1150 = vmatpush1.bf16.msra.mxu0 %v1041
    %1151 = vmatprep.subr.bf16.mxu0 0
    %1152 = vmatpush1.bf16.msra.mxu0 %v1042
    %1153 = vmatprep.subr.bf16.mxu0 0
    %1154 = vmatpush1.bf16.msra.mxu0 %v1043
    %1155 = vmatprep.subr.bf16.mxu0 0
    %1156 = vmatpush1.bf16.msra.mxu0 %v1044
    %1157 = vmatprep.mubr.bf16.mxu0 %v723
    %1158 = vmatmul.mubr.bf16.gmra.mrb[0].mxu0 %v722
    %v1159 = vpop.f32.mrb[0].mxu0
    %v1160 = vadd.f32 %v835, %v1159
    %v1161 = vpop.f32.mrb[0].mxu0
    %v1162 = vpop.f32.mrb[0].mxu0
    %v1163 = vadd.f32 %v835, %v1162
    %v1164 = vpop.f32.mrb[0].mxu0
    %1165 = vmatprep.mubr.bf16.mxu0 %v729
    %1166 = vmatmul.mubr.bf16.gmra.mrb[0].mxu0 %v728
    %v1167 = vpop.f32.mrb[0].mxu0
    %v1168 = vadd.f32 %v835, %v1167
    %v1169 = vpop.f32.mrb[0].mxu0
    %v1170 = vpop.f32.mrb[0].mxu0
    %v1171 = vadd.f32 %v835, %v1170
    %v1172 = vpop.f32.mrb[0].mxu0
    %1173 = vdwg.mxu0
    %1174 = vmatprep.subr.bf16.mxu0 0
    %1175 = vmatpush1.bf16.msra.mxu0 %v1045
    %1176 = vmatprep.subr.bf16.mxu0 0
    %1177 = vmatpush1.bf16.msra.mxu0 %v1046
    %1178 = vmatprep.subr.bf16.mxu0 0
    %1179 = vmatpush1.bf16.msra.mxu0 %v1047
    %1180 = vmatprep.subr.bf16.mxu0 0
    %1181 = vmatpush1.bf16.msra.mxu0 %v1048
    %1182 = vmatprep.subr.bf16.mxu0 0
    %1183 = vmatpush1.bf16.msra.mxu0 %v1049
    %1184 = vmatprep.subr.bf16.mxu0 0
    %1185 = vmatpush1.bf16.msra.mxu0 %v1050
    %1186 = vmatprep.subr.bf16.mxu0 0
    %1187 = vmatpush1.bf16.msra.mxu0 %v1051
    %1188 = vmatprep.subr.bf16.mxu0 0
    %1189 = vmatpush1.bf16.msra.mxu0 %v1052
    %1190 = vmatprep.subr.bf16.mxu0 0
    %1191 = vmatpush1.bf16.msra.mxu0 %v1053
    %1192 = vmatprep.subr.bf16.mxu0 0
    %1193 = vmatpush1.bf16.msra.mxu0 %v1054
    %1194 = vmatprep.subr.bf16.mxu0 0
    %1195 = vmatpush1.bf16.msra.mxu0 %v1055
    %1196 = vmatprep.subr.bf16.mxu0 0
    %1197 = vmatpush1.bf16.msra.mxu0 %v1056
    %1198 = vmatprep.subr.bf16.mxu0 0
    %1199 = vmatpush1.bf16.msra.mxu0 %v1057
    %1200 = vmatprep.subr.bf16.mxu0 0
    %1201 = vmatpush1.bf16.msra.mxu0 %v1058
    %1202 = vmatprep.subr.bf16.mxu0 0
    %1203 = vmatpush1.bf16.msra.mxu0 %v1059
    %1204 = vmatprep.subr.bf16.mxu0 0
    %1205 = vmatpush1.bf16.msra.mxu0 %v1060
    %1206 = vmatprep.mubr.bf16.mxu0 %v725
    %1207 = vmatmul.mubr.bf16.gmra.mrb[0].mxu0 %v724
    %v1208 = vpop.f32.mrb[0].mxu0
    %v1209 = vadd.f32 %v1160, %v1208
    %v1210 = vpop.f32.mrb[0].mxu0
    %v1211 = vpop.f32.mrb[0].mxu0
    %v1212 = vadd.f32 %v1163, %v1211
    %v1213 = vpop.f32.mrb[0].mxu0
    %1214 = vmatprep.mubr.bf16.mxu0 %v731
    %1215 = vmatmul.mubr.bf16.gmra.mrb[0].mxu0 %v730
    %v1216 = vpop.f32.mrb[0].mxu0
    %v1217 = vadd.f32 %v1168, %v1216
    %v1218 = vpop.f32.mrb[0].mxu0
    %v1219 = vpop.f32.mrb[0].mxu0
    %v1220 = vadd.f32 %v1171, %v1219
    %v1221 = vpop.f32.mrb[0].mxu0
    %1222 = vdwg.mxu0
    %1223 = vmatprep.subr.bf16.mxu0 0
    %1224 = vmatpush1.bf16.msra.mxu0 %v1061
    %1225 = vmatprep.subr.bf16.mxu0 0
    %1226 = vmatpush1.bf16.msra.mxu0 %v1062
    %1227 = vmatprep.subr.bf16.mxu0 0
    %1228 = vmatpush1.bf16.msra.mxu0 %v1063
    %1229 = vmatprep.subr.bf16.mxu0 0
    %1230 = vmatpush1.bf16.msra.mxu0 %v1064
    %1231 = vmatprep.subr.bf16.mxu0 0
    %1232 = vmatpush1.bf16.msra.mxu0 %v1065
    %1233 = vmatprep.subr.bf16.mxu0 0
    %1234 = vmatpush1.bf16.msra.mxu0 %v1066
    %1235 = vmatprep.subr.bf16.mxu0 0
    %1236 = vmatpush1.bf16.msra.mxu0 %v1067
    %1237 = vmatprep.subr.bf16.mxu0 0
    %1238 = vmatpush1.bf16.msra.mxu0 %v1068
    %1239 = vmatprep.subr.bf16.mxu0 0
    %1240 = vmatpush1.bf16.msra.mxu0 %v1069
    %1241 = vmatprep.subr.bf16.mxu0 0
    %1242 = vmatpush1.bf16.msra.mxu0 %v1070
    %1243 = vmatprep.subr.bf16.mxu0 0
    %1244 = vmatpush1.bf16.msra.mxu0 %v1071
    %1245 = vmatprep.subr.bf16.mxu0 0
    %1246 = vmatpush1.bf16.msra.mxu0 %v1072
    %1247 = vmatprep.subr.bf16.mxu0 0
    %1248 = vmatpush1.bf16.msra.mxu0 %v1073
    %1249 = vmatprep.subr.bf16.mxu0 0
    %1250 = vmatpush1.bf16.msra.mxu0 %v1074
    %1251 = vmatprep.subr.bf16.mxu0 0
    %1252 = vmatpush1.bf16.msra.mxu0 %v1075
    %1253 = vmatprep.subr.bf16.mxu0 0
    %1254 = vmatpush1.bf16.msra.mxu0 %v1076
    %1255 = vmatprep.mubr.bf16.mxu0 %v727
    %1256 = vmatmul.mubr.bf16.gmra.mrb[0].mxu0 %v726
    %v1257 = vpop.f32.mrb[0].mxu0
    %v1258 = vadd.f32 %v1209, %v1257
    %v1259 = vpop.f32.mrb[0].mxu0
    %v1260 = vpop.f32.mrb[0].mxu0
    %v1261 = vadd.f32 %v1212, %v1260
    %v1262 = vpop.f32.mrb[0].mxu0
    %1263 = vmatprep.mubr.bf16.mxu0 %v733
    %1264 = vmatmul.mubr.bf16.gmra.mrb[0].mxu0 %v732
    %v1265 = vpop.f32.mrb[0].mxu0
    %v1266 = vadd.f32 %v1217, %v1265
    %v1267 = vpop.f32.mrb[0].mxu0
    %v1268 = vpop.f32.mrb[0].mxu0
    %v1269 = vadd.f32 %v1220, %v1268
    %v1270 = vpop.f32.mrb[0].mxu0
    %1271 = vdwg.mxu0
    %v1272 = vxor.u32 %v1258, 2147483648
    %v1273 = vxor.u32 %v1261, 2147483648
    %v1274 = vxor.u32 %v1266, 2147483648
    %v1275 = vxor.u32 %v1269, 2147483648
    %v1276 = vmul.f32 %v1272, 1.442695
    %v1277 = vpow.pop %v1276
    %v1278 = vmul.f32 %v1273, 1.442695
    %v1279 = vpow.pop %v1278
    %v1280 = vmul.f32 %v1274, 1.442695
    %v1281 = vpow.pop %v1280
    %v1282 = vmul.f32 %v1275, 1.442695
    %v1283 = vpow.pop %v1282
    %v1284 = vadd.f32 %v1277, 1.0
    %v1285 = vadd.f32 %v1279, 1.0
    %v1286 = vadd.f32 %v1281, 1.0
    %v1287 = vadd.f32 %v1283, 1.0
    %v1288 = vrcp.pop %v1284
    %v1289 = vmul.f32 1.0, %v1288
    %v1290 = vrcp.pop %v1285
    %v1291 = vmul.f32 1.0, %v1290
    %v1292 = vrcp.pop %v1286
    %v1293 = vmul.f32 1.0, %v1292
    %v1294 = vrcp.pop %v1287
    %v1295 = vmul.f32 1.0, %v1294
    %v1296 = vmul.f32 %v1258, %v1289
    %v1297 = vmul.f32 %v1261, %v1291
    %v1298 = vmul.f32 %v1266, %v1293
    %v1299 = vmul.f32 %v1269, %v1295
    %v1300 = vadd.f32 %v63, %v1296
    %v1301 = vadd.f32 %v64, %v1297
    %v1302 = vadd.f32 %v65, %v1298
    %v1303 = vadd.f32 %v66, %v1299
    %1304 = vst [vmem:[#allocation8] sm:$0xff] %v1300
    %1305 = vst [vmem:[#allocation8 + $0x8] sm:$0xff] %v1301
    %1306 = vst [vmem:[#allocation8 + $0x10] sm:$0xff] %v1302
    %1307 = vst [vmem:[#allocation8 + $0x18] sm:$0xff] %v1303
    // Predicated region
    $region34: #{tpu_custom_call.1} parent=1 // pred_check
      _
    $region35: #{tpu_custom_call.1} parent=1 // pred_check_branch
      %1309 = sbr.rel (0) target = $region37
    $region36: #{tpu_custom_call.1} parent=1 // pred_region
      %s1311 = ssub.s32 512, 512
      %1312 = vsyncadd [#allocation4], %s1311
      %s1313 = sshll.u32 [#allocation8], 4
      %s1314 = int_to_ptr.vmem [resolvable:$true] %s1313
      %1319 = dma.vmem_to_hbm [thread:$0]  %s1314, 512, %s5, [#allocation4], 128, 128, 8
    $region37: #{tpu_custom_call.1} parent=1 // pred_fallthru
      _
    // Predicated region
    $region38: #{tpu_custom_call.1} parent=1 // pred_check
      _
    $region39: #{tpu_custom_call.1} parent=1 // pred_check_branch
      %1321 = sbr.rel (0) target = $region41
    $region40: #{tpu_custom_call.1} parent=1 // pred_region
      %1322 = dma.done [#allocation4], 512
    $region41: #{tpu_custom_call.1} parent=1 // pred_fallthru
      _
    %1323 = vsyncpa [#allocation3], 1
    %1324 = vsyncpa [#allocation6], 1
    %1325 = vsyncpa [#allocation4], 1

</llo_original>
